<compile_context>
chip_gen: v6e
topology: v6e:2x2x1
jax: 0.10.0
libtpu: 0.0.40
codegen_flags: <defaults>
</compile_context>

<pallas_src>
import functools
import math

import jax
import jax.numpy as jnp
from jax.experimental import pallas as pl
from jax.experimental.pallas import tpu as pltpu


def _round_up(x, m):
    return (x + m - 1) // m * m


# ----------------------------------------------------------------------------
# Fused MLP kernel: all layers in one kernel, everything VMEM-resident.
# ----------------------------------------------------------------------------
def _fused_mlp_kernel(x_ref, w_ref, b_ref, o_ref, *, num_layers):
    # x_ref: (Mp, Dp) f32   w_ref: (L, Dp, Dp) bf16   b_ref: (L, 1, Dp) f32
    # o_ref: (Mp, Dp) f32.  Padded rows/cols of W and b are zero, so padded
    # activation columns stay zero through every layer.
    h = x_ref[...].astype(jnp.bfloat16)            # MXU input dtype
    y = None
    for layer in range(num_layers):                # static unroll (L is small)
        y = jnp.dot(h, w_ref[layer], preferred_element_type=jnp.float32)
        y = y + b_ref[layer]                       # f32 bias epilogue
        h = y.astype(jnp.bfloat16)                 # next layer's MXU input
    o_ref[...] = y                                 # final layer written in f32


def fused_mlp(xp, wp, bp, *, num_layers):
    """xp: (Mp, Dp) f32, wp: (L, Dp, Dp) bf16, bp: (L, 1, Dp) f32 -> (Mp, Dp) f32."""
    Mp, Dp = xp.shape

    # Derived VMEM budget: full working set (no pipelining, single block) + headroom.
    working_set = xp.size * 4 + wp.size * 2 + bp.size * 4 + Mp * Dp * 4
    vmem_limit = int(_round_up(2 * working_set + (4 << 20), 1 << 20))

    cost = pl.CostEstimate(
        flops=2 * Mp * Dp * Dp * num_layers,
        transcendentals=0,
        bytes_accessed=working_set,
    )

    return pl.pallas_call(
        functools.partial(_fused_mlp_kernel, num_layers=num_layers),
        out_shape=jax.ShapeDtypeStruct((Mp, Dp), jnp.float32),
        in_specs=[
            pl.BlockSpec(memory_space=pltpu.MemorySpace.VMEM),
            pl.BlockSpec(memory_space=pltpu.MemorySpace.VMEM),
            pl.BlockSpec(memory_space=pltpu.MemorySpace.VMEM),
        ],
        out_specs=pl.BlockSpec(memory_space=pltpu.MemorySpace.VMEM),
        compiler_params=pltpu.CompilerParams(vmem_limit_bytes=vmem_limit),
        cost_estimate=cost,
    )(xp, wp, bp)


# ----------------------------------------------------------------------------
# MLP plumbing (mirrors the PyTorch __init__ / forward)
# ----------------------------------------------------------------------------
def mlp_layer_dims(nf_in, nf_out, num_blocks):
    dims = []
    in_dim = nf_in
    out_dim = nf_in
    dims.append((in_dim, out_dim))                       # Linear(nf_in, nf_in)
    ratio = int(2 ** (int(math.log2(nf_out / nf_in)) / (num_blocks - 1)))
    for _ in range(num_blocks - 2):
        in_dim = out_dim
        out_dim = min(in_dim * ratio, nf_out)
        dims.append((in_dim, out_dim))
    dims.append((out_dim, nf_out))                       # Linear(out_dim, nf_out)
    return dims


def init_params(key, nf_in, nf_out, num_blocks):
    dims = mlp_layer_dims(nf_in, nf_out, num_blocks)
    ws, bs = [], []
    for (cin, cout) in dims:
        key, kw, kb = jax.random.split(key, 3)
        ws.append(jax.random.normal(kw, (cin, cout), jnp.float32) * 0.05)
        bs.append(jax.random.normal(kb, (cout,), jnp.float32) * 0.01)
    return {"w": ws, "b": bs}


def prepare_params(params):
    """Pad every layer to a common (Dp, Dp) bf16 weight / (1, Dp) f32 bias and
    stack them — done ONCE, outside the forward path."""
    dims = [(w.shape[0], w.shape[1]) for w in params["w"]]
    num_layers = len(dims)
    d_max = max(max(cin, cout) for cin, cout in dims)
    d_pad = _round_up(d_max, 128)                        # lane-dense width

    wp = jnp.zeros((num_layers, d_pad, d_pad), jnp.bfloat16)
    bp = jnp.zeros((num_layers, 1, d_pad), jnp.float32)
    for l, (w, b) in enumerate(zip(params["w"], params["b"])):
        cin, cout = w.shape
        wp = wp.at[l, :cin, :cout].set(w.astype(jnp.bfloat16))
        bp = bp.at[l, 0, :cout].set(b.astype(jnp.float32))
    return {"w": wp, "b": bp}


def mlp_forward(fast_params, x, *, n_out):
    # PyTorch: x = x.reshape(x.size(0), -1); then Sequential of Linear layers.
    h = x.reshape(x.shape[0], -1).astype(jnp.float32)
    m, k = h.shape
    wp = fast_params["w"]
    bp = fast_params["b"]
    num_layers, d_pad, _ = wp.shape
    assert k <= d_pad

    m_pad = _round_up(max(m, 8), 8)                      # f32 sublane multiple
    xp = jnp.pad(h, ((0, m_pad - m), (0, d_pad - k)))    # zero-padding is exact

    out = fused_mlp(xp, wp, bp, num_layers=num_layers)
    return out[:m, :n_out]


def mlp_reference(params, x):
    # Pure-JAX reference with the same per-layer bf16 rounding as the kernel.
    h = x.reshape(x.shape[0], -1).astype(jnp.float32)
    for w, b in zip(params["w"], params["b"]):
        hb = h.astype(jnp.bfloat16).astype(jnp.float32)
        wb = w.astype(jnp.bfloat16).astype(jnp.float32)
        h = jnp.dot(hb, wb) + b                          # activate=None
    return h


# ----------------------------------------------------------------------------
if __name__ == "__main__":
    nf_in, nf_out, num_blocks = 32, 256, 4   # layer widths: 32->32->64->128->256
    batch = 2

    root = jax.random.PRNGKey(0)
    kp, kx = jax.random.split(root)
    params = init_params(kp, nf_in, nf_out, num_blocks)
    fast_params = prepare_params(params)     # padded + bf16 weights, done once

    # (B, 2, 4, 4) flattens to nf_in = 32 features, exercising the reshape.
    x = jax.random.normal(kx, (batch, 2, 4, 4), jnp.float32)

    fwd = jax.jit(functools.partial(mlp_forward, n_out=nf_out))
    out = fwd(fast_params, x)
    jax.block_until_ready(out)

    assert out.shape == (batch, nf_out)
    assert bool(jnp.all(jnp.isfinite(out)))

    ref = mlp_reference(params, x)
    max_err = float(jnp.max(jnp.abs(out - ref)))
    assert bool(jnp.allclose(out, ref, rtol=2e-2, atol=1e-3)), max_err

    print("KERNEL_OK")
</pallas_src>

<mosaic_0001>
module attributes {stable_mosaic.version = 11 : i64} {
  func.func @_fused_mlp_kernel(%arg0: memref<8x256xf32, #tpu.memory_space<vmem>>, %arg1: memref<4x256x256xbf16, #tpu.memory_space<vmem>>, %arg2: memref<4x1x256xf32, #tpu.memory_space<vmem>>, %arg3: memref<8x256xf32, #tpu.memory_space<vmem>>) attributes {dimension_semantics = [], scalar_prefetch = 0 : i64, scratch_operands = 0 : i64, tpu.core_type = #tpu.core_type<tc>} {
    %c0 = arith.constant 0 : index
    %c0_0 = arith.constant 0 : index
    %0 = vector.load %arg0[%c0, %c0_0] : memref<8x256xf32, #tpu.memory_space<vmem>>, vector<8x256xf32>
    %1 = arith.truncf %0 : vector<8x256xf32> to vector<8x256xbf16>
    %c0_1 = arith.constant 0 : index
    %c0_2 = arith.constant 0 : index
    %c0_3 = arith.constant 0 : index
    %2 = vector.load %arg1[%c0_1, %c0_2, %c0_3] : memref<4x256x256xbf16, #tpu.memory_space<vmem>>, vector<1x256x256xbf16>
    %3 = vector.shape_cast %2 : vector<1x256x256xbf16> to vector<256x256xbf16>
    %cst = arith.constant dense<0.000000e+00> : vector<8x256xf32>
    %4 = tpu.matmul %1, %3, %cst {dimension_numbers = #tpu.dot_dimension_numbers<[1], [0], [0], [1], [0, 0, 1, 1], [], []>} : vector<8x256xbf16>, vector<256x256xbf16>, vector<8x256xf32> -> vector<8x256xf32>
    %c0_4 = arith.constant 0 : index
    %c0_5 = arith.constant 0 : index
    %c0_6 = arith.constant 0 : index
    %5 = vector.load %arg2[%c0_4, %c0_5, %c0_6] : memref<4x1x256xf32, #tpu.memory_space<vmem>>, vector<1x1x256xf32>
    %6 = vector.shape_cast %5 : vector<1x1x256xf32> to vector<1x256xf32>
    %7 = vector.broadcast %6 : vector<1x256xf32> to vector<8x256xf32>
    %8 = arith.addf %4, %7 : vector<8x256xf32>
    %9 = arith.truncf %8 : vector<8x256xf32> to vector<8x256xbf16>
    %c1 = arith.constant 1 : index
    %c0_7 = arith.constant 0 : index
    %c0_8 = arith.constant 0 : index
    %10 = vector.load %arg1[%c1, %c0_7, %c0_8] : memref<4x256x256xbf16, #tpu.memory_space<vmem>>, vector<1x256x256xbf16>
    %11 = vector.shape_cast %10 : vector<1x256x256xbf16> to vector<256x256xbf16>
    %cst_9 = arith.constant dense<0.000000e+00> : vector<8x256xf32>
    %12 = tpu.matmul %9, %11, %cst_9 {dimension_numbers = #tpu.dot_dimension_numbers<[1], [0], [0], [1], [0, 0, 1, 1], [], []>} : vector<8x256xbf16>, vector<256x256xbf16>, vector<8x256xf32> -> vector<8x256xf32>
    %c1_10 = arith.constant 1 : index
    %c0_11 = arith.constant 0 : index
    %c0_12 = arith.constant 0 : index
    %13 = vector.load %arg2[%c1_10, %c0_11, %c0_12] : memref<4x1x256xf32, #tpu.memory_space<vmem>>, vector<1x1x256xf32>
    %14 = vector.shape_cast %13 : vector<1x1x256xf32> to vector<1x256xf32>
    %15 = vector.broadcast %14 : vector<1x256xf32> to vector<8x256xf32>
    %16 = arith.addf %12, %15 : vector<8x256xf32>
    %17 = arith.truncf %16 : vector<8x256xf32> to vector<8x256xbf16>
    %c2 = arith.constant 2 : index
    %c0_13 = arith.constant 0 : index
    %c0_14 = arith.constant 0 : index
    %18 = vector.load %arg1[%c2, %c0_13, %c0_14] : memref<4x256x256xbf16, #tpu.memory_space<vmem>>, vector<1x256x256xbf16>
    %19 = vector.shape_cast %18 : vector<1x256x256xbf16> to vector<256x256xbf16>
    %cst_15 = arith.constant dense<0.000000e+00> : vector<8x256xf32>
    %20 = tpu.matmul %17, %19, %cst_15 {dimension_numbers = #tpu.dot_dimension_numbers<[1], [0], [0], [1], [0, 0, 1, 1], [], []>} : vector<8x256xbf16>, vector<256x256xbf16>, vector<8x256xf32> -> vector<8x256xf32>
    %c2_16 = arith.constant 2 : index
    %c0_17 = arith.constant 0 : index
    %c0_18 = arith.constant 0 : index
    %21 = vector.load %arg2[%c2_16, %c0_17, %c0_18] : memref<4x1x256xf32, #tpu.memory_space<vmem>>, vector<1x1x256xf32>
    %22 = vector.shape_cast %21 : vector<1x1x256xf32> to vector<1x256xf32>
    %23 = vector.broadcast %22 : vector<1x256xf32> to vector<8x256xf32>
    %24 = arith.addf %20, %23 : vector<8x256xf32>
    %25 = arith.truncf %24 : vector<8x256xf32> to vector<8x256xbf16>
    %c3 = arith.constant 3 : index
    %c0_19 = arith.constant 0 : index
    %c0_20 = arith.constant 0 : index
    %26 = vector.load %arg1[%c3, %c0_19, %c0_20] : memref<4x256x256xbf16, #tpu.memory_space<vmem>>, vector<1x256x256xbf16>
    %27 = vector.shape_cast %26 : vector<1x256x256xbf16> to vector<256x256xbf16>
    %cst_21 = arith.constant dense<0.000000e+00> : vector<8x256xf32>
    %28 = tpu.matmul %25, %27, %cst_21 {dimension_numbers = #tpu.dot_dimension_numbers<[1], [0], [0], [1], [0, 0, 1, 1], [], []>} : vector<8x256xbf16>, vector<256x256xbf16>, vector<8x256xf32> -> vector<8x256xf32>
    %c3_22 = arith.constant 3 : index
    %c0_23 = arith.constant 0 : index
    %c0_24 = arith.constant 0 : index
    %29 = vector.load %arg2[%c3_22, %c0_23, %c0_24] : memref<4x1x256xf32, #tpu.memory_space<vmem>>, vector<1x1x256xf32>
    %30 = vector.shape_cast %29 : vector<1x1x256xf32> to vector<1x256xf32>
    %31 = vector.broadcast %30 : vector<1x256xf32> to vector<8x256xf32>
    %32 = arith.addf %28, %31 : vector<8x256xf32>
    %c0_25 = arith.constant 0 : index
    %c0_26 = arith.constant 0 : index
    %33 = vector.load %arg3[%c0_25, %c0_26] : memref<8x256xf32, #tpu.memory_space<vmem>>, vector<8x256xf32>
    tpu.vector_store %arg3[%c0_25, %c0_26], %32 {strides = array<i32>} : memref<8x256xf32, #tpu.memory_space<vmem>>, vector<8x256xf32>,
    return
  }
}

</mosaic_0001>

<llo_original>
// kernel: mlp_forward.1
$region0: #{mlp_forward.1}
  #allocation0 [shape = 'u32[]', space=smem, size = 0x4, offset = 0x4, fixed_abs, tag = 'smem constant byte address 0x4 - core index']
  #allocation1 [shape = 'u32[144,128]{1,0:T(1,128)}', space=vmem, size = 0x12000, scoped, tag = 'internal scratch']
  %s0 = inlined_call_operand.vmem [shape: f32[8,256], index: 0, kind: input, shape index: {}]
  %s1 = inlined_call_operand.hbm [shape: bf16[4,256,256], index: 1, kind: input, shape index: {}]
  %s2 = inlined_call_operand.vmem [shape: f32[4,1,256], index: 2, kind: input, shape index: {}]
  %s3 = inlined_call_operand.vmem [shape: f32[8,256], index: 3, kind: output, shape index: {}]
  %s4 = sld [smem:[#allocation0]]
  $region26: #{mlp_forward.1} parent=0
    _
  %s6 = ssub.s32 1, %s4
  %s7 = scalar_select 0, %s6, %s4
  $region1: #{mlp_forward.1} parent=0
    #allocation2 [shape = 'u8[524288]{0}', space=vmem, size = 0x80000, scoped, tag = 'input window, operand 1, single buffered']
    #allocation3 [shape = 's32[1]{0}', space=sflag, size = 0x4, scoped, tag = 'scoped memory for mlp_forward.1']
    %8 = vsyncpa [#allocation3], 0
    // Predicated region
    $region2: #{mlp_forward.1} parent=1 // pred_check
      _
    $region3: #{mlp_forward.1} parent=1 // pred_check_branch
      %10 = sbr.rel (0) target = $region5
    $region4: #{mlp_forward.1} parent=1 // pred_region
      _
    $region5: #{mlp_forward.1} parent=1 // pred_fallthru
      _
    // Predicated region
    $region6: #{mlp_forward.1} parent=1 // pred_check
      _
    $region7: #{mlp_forward.1} parent=1 // pred_check_branch
      %12 = sbr.rel (0) target = $region9
    $region8: #{mlp_forward.1} parent=1 // pred_region
      %s14 = ssub.s32 16384, 16384
      %15 = vsyncadd [#allocation3], %s14
      %s16 = sshll.u32 [#allocation2], 4
      %s17 = int_to_ptr.vmem [resolvable:$true] %s16
      %22 = dma.hbm_to_vmem [thread:$0]  %s1, 16384, %s17, [#allocation3], 128, 128, 8
    $region9: #{mlp_forward.1} parent=1 // pred_fallthru
      _
    // Predicated region
    $region10: #{mlp_forward.1} parent=1 // pred_check
      _
    $region11: #{mlp_forward.1} parent=1 // pred_check_branch
      %24 = sbr.rel (0) target = $region13
    $region12: #{mlp_forward.1} parent=1 // pred_region
      _
    $region13: #{mlp_forward.1} parent=1 // pred_fallthru
      _
    // Predicated region
    $region14: #{mlp_forward.1} parent=1 // pred_check
      _
    $region15: #{mlp_forward.1} parent=1 // pred_check_branch
      %26 = sbr.rel (0) target = $region17
    $region16: #{mlp_forward.1} parent=1 // pred_region
      %27 = dma.done [#allocation3], 16384
    $region17: #{mlp_forward.1} parent=1 // pred_fallthru
      _
    %v28 = vld [vmem:[%s0] sm:$0xff]
    %v29 = vld [vmem:[%s0 + $0x8] sm:$0xff]
    %v30 = vpack.c.bf16 %v28, %v28
    %v31 = vpack.c.bf16 %v29, %v29
    %v32 = vld [vmem:[#allocation2] sm:$0xff]
    %v33 = vld [vmem:[#allocation2 + $0x8] sm:$0xff]
    %v34 = vld [vmem:[#allocation2 + $0x10] sm:$0xff]
    %v35 = vld [vmem:[#allocation2 + $0x18] sm:$0xff]
    %v36 = vld [vmem:[#allocation2 + $0x20] sm:$0xff]
    %v37 = vld [vmem:[#allocation2 + $0x28] sm:$0xff]
    %v38 = vld [vmem:[#allocation2 + $0x30] sm:$0xff]
    %v39 = vld [vmem:[#allocation2 + $0x38] sm:$0xff]
    %v40 = vld [vmem:[#allocation2 + $0x40] sm:$0xff]
    %v41 = vld [vmem:[#allocation2 + $0x48] sm:$0xff]
    %v42 = vld [vmem:[#allocation2 + $0x50] sm:$0xff]
    %v43 = vld [vmem:[#allocation2 + $0x58] sm:$0xff]
    %v44 = vld [vmem:[#allocation2 + $0x60] sm:$0xff]
    %v45 = vld [vmem:[#allocation2 + $0x68] sm:$0xff]
    %v46 = vld [vmem:[#allocation2 + $0x70] sm:$0xff]
    %v47 = vld [vmem:[#allocation2 + $0x78] sm:$0xff]
    %v48 = vld [vmem:[#allocation2 + $0x80] sm:$0xff]
    %v49 = vld [vmem:[#allocation2 + $0x88] sm:$0xff]
    %v50 = vld [vmem:[#allocation2 + $0x90] sm:$0xff]
    %v51 = vld [vmem:[#allocation2 + $0x98] sm:$0xff]
    %v52 = vld [vmem:[#allocation2 + $0xa0] sm:$0xff]
    %v53 = vld [vmem:[#allocation2 + $0xa8] sm:$0xff]
    %v54 = vld [vmem:[#allocation2 + $0xb0] sm:$0xff]
    %v55 = vld [vmem:[#allocation2 + $0xb8] sm:$0xff]
    %v56 = vld [vmem:[#allocation2 + $0xc0] sm:$0xff]
    %v57 = vld [vmem:[#allocation2 + $0xc8] sm:$0xff]
    %v58 = vld [vmem:[#allocation2 + $0xd0] sm:$0xff]
    %v59 = vld [vmem:[#allocation2 + $0xd8] sm:$0xff]
    %v60 = vld [vmem:[#allocation2 + $0xe0] sm:$0xff]
    %v61 = vld [vmem:[#allocation2 + $0xe8] sm:$0xff]
    %v62 = vld [vmem:[#allocation2 + $0xf0] sm:$0xff]
    %v63 = vld [vmem:[#allocation2 + $0xf8] sm:$0xff]
    %v64 = vld [vmem:[%s2] sm:$0x3]
    %v66 = vlaneseq
    %v67 = vshrl.u32 %v66, 7
    %v68 = vsub.s32 0, %v67
    %v69 = vrot.slane %v64, %v68
    %v70 = vlaneseq
    %v71 = vshrl.u32 %v70, 7
    %v72 = vsub.s32 1, %v71
    %v73 = vrot.slane %v64, %v72
    %v108 = vunpack.c.l.b16 %v32
    %v109 = vunpack.c.h.b16 %v32
    %v110 = vunpack.c.l.b16 %v33
    %v111 = vunpack.c.h.b16 %v33
    %v112 = vunpack.c.l.b16 %v34
    %v113 = vunpack.c.h.b16 %v34
    %v114 = vunpack.c.l.b16 %v35
    %v115 = vunpack.c.h.b16 %v35
    %v116 = vunpack.c.l.b16 %v36
    %v117 = vunpack.c.h.b16 %v36
    %v118 = vunpack.c.l.b16 %v37
    %v119 = vunpack.c.h.b16 %v37
    %v120 = vunpack.c.l.b16 %v38
    %v121 = vunpack.c.h.b16 %v38
    %v122 = vunpack.c.l.b16 %v39
    %v123 = vunpack.c.h.b16 %v39
    %v124 = vunpack.c.l.b16 %v40
    %v125 = vunpack.c.h.b16 %v40
    %v126 = vunpack.c.l.b16 %v41
    %v127 = vunpack.c.h.b16 %v41
    %v128 = vunpack.c.l.b16 %v42
    %v129 = vunpack.c.h.b16 %v42
    %v130 = vunpack.c.l.b16 %v43
    %v131 = vunpack.c.h.b16 %v43
    %v132 = vunpack.c.l.b16 %v44
    %v133 = vunpack.c.h.b16 %v44
    %v134 = vunpack.c.l.b16 %v45
    %v135 = vunpack.c.h.b16 %v45
    %v136 = vunpack.c.l.b16 %v46
    %v137 = vunpack.c.h.b16 %v46
    %v138 = vunpack.c.l.b16 %v47
    %v139 = vunpack.c.h.b16 %v47
    %v140 = vunpack.c.l.b16 %v48
    %v141 = vunpack.c.h.b16 %v48
    %v142 = vunpack.c.l.b16 %v49
    %v143 = vunpack.c.h.b16 %v49
    %v144 = vunpack.c.l.b16 %v50
    %v145 = vunpack.c.h.b16 %v50
    %v146 = vunpack.c.l.b16 %v51
    %v147 = vunpack.c.h.b16 %v51
    %v148 = vunpack.c.l.b16 %v52
    %v149 = vunpack.c.h.b16 %v52
    %v150 = vunpack.c.l.b16 %v53
    %v151 = vunpack.c.h.b16 %v53
    %v152 = vunpack.c.l.b16 %v54
    %v153 = vunpack.c.h.b16 %v54
    %v154 = vunpack.c.l.b16 %v55
    %v155 = vunpack.c.h.b16 %v55
    %v156 = vunpack.c.l.b16 %v56
    %v157 = vunpack.c.h.b16 %v56
    %v158 = vunpack.c.l.b16 %v57
    %v159 = vunpack.c.h.b16 %v57
    %v160 = vunpack.c.l.b16 %v58
    %v161 = vunpack.c.h.b16 %v58
    %v162 = vunpack.c.l.b16 %v59
    %v163 = vunpack.c.h.b16 %v59
    %v164 = vunpack.c.l.b16 %v60
    %v165 = vunpack.c.h.b16 %v60
    %v166 = vunpack.c.l.b16 %v61
    %v167 = vunpack.c.h.b16 %v61
    %v168 = vunpack.c.l.b16 %v62
    %v169 = vunpack.c.h.b16 %v62
    %v170 = vunpack.c.l.b16 %v63
    %v171 = vunpack.c.h.b16 %v63
    %v172 = vpack.c.b16 %v110, %v108
    %v173 = vpack.c.b16 %v111, %v109
    %v174 = vpack.c.b16 %v114, %v112
    %v175 = vpack.c.b16 %v115, %v113
    %v176 = vpack.c.b16 %v118, %v116
    %v177 = vpack.c.b16 %v119, %v117
    %v178 = vpack.c.b16 %v122, %v120
    %v179 = vpack.c.b16 %v123, %v121
    %v180 = vpack.c.b16 %v126, %v124
    %v181 = vpack.c.b16 %v127, %v125
    %v182 = vpack.c.b16 %v130, %v128
    %v183 = vpack.c.b16 %v131, %v129
    %v184 = vpack.c.b16 %v134, %v132
    %v185 = vpack.c.b16 %v135, %v133
    %v186 = vpack.c.b16 %v138, %v136
    %v187 = vpack.c.b16 %v139, %v137
    %v188 = vpack.c.b16 %v142, %v140
    %v189 = vpack.c.b16 %v143, %v141
    %v190 = vpack.c.b16 %v146, %v144
    %v191 = vpack.c.b16 %v147, %v145
    %v192 = vpack.c.b16 %v150, %v148
    %v193 = vpack.c.b16 %v151, %v149
    %v194 = vpack.c.b16 %v154, %v152
    %v195 = vpack.c.b16 %v155, %v153
    %v196 = vpack.c.b16 %v158, %v156
    %v197 = vpack.c.b16 %v159, %v157
    %v198 = vpack.c.b16 %v162, %v160
    %v199 = vpack.c.b16 %v163, %v161
    %v200 = vpack.c.b16 %v166, %v164
    %v201 = vpack.c.b16 %v167, %v165
    %v202 = vpack.c.b16 %v170, %v168
    %v203 = vpack.c.b16 %v171, %v169
    %236 = vmatprep.subr.bf16.mxu0 %v187
    %237 = vmatpush1.bf16.msra.mxu0 %v186
    %238 = vmatprep.subr.bf16.mxu0 %v185
    %239 = vmatpush1.bf16.msra.mxu0 %v184
    %240 = vmatprep.subr.bf16.mxu0 %v183
    %241 = vmatpush1.bf16.msra.mxu0 %v182
    %242 = vmatprep.subr.bf16.mxu0 %v181
    %243 = vmatpush1.bf16.msra.mxu0 %v180
    %244 = vmatprep.subr.bf16.mxu0 %v179
    %245 = vmatpush1.bf16.msra.mxu0 %v178
    %246 = vmatprep.subr.bf16.mxu0 %v177
    %247 = vmatpush1.bf16.msra.mxu0 %v176
    %248 = vmatprep.subr.bf16.mxu0 %v175
    %249 = vmatpush1.bf16.msra.mxu0 %v174
    %250 = vmatprep.subr.bf16.mxu0 %v173
    %251 = vmatpush1.bf16.msra.mxu0 %v172
    %252 = vmatprep.subr.bf16.mxu0 %v203
    %253 = vmatpush2.bf16.msra.mxu0 %v202
    %254 = vmatprep.subr.bf16.mxu0 %v201
    %255 = vmatpush2.bf16.msra.mxu0 %v200
    %256 = vmatprep.subr.bf16.mxu0 %v199
    %257 = vmatpush2.bf16.msra.mxu0 %v198
    %258 = vmatprep.subr.bf16.mxu0 %v197
    %259 = vmatpush2.bf16.msra.mxu0 %v196
    %260 = vmatprep.subr.bf16.mxu0 %v195
    %261 = vmatpush2.bf16.msra.mxu0 %v194
    %262 = vmatprep.subr.bf16.mxu0 %v193
    %263 = vmatpush2.bf16.msra.mxu0 %v192
    %264 = vmatprep.subr.bf16.mxu0 %v191
    %265 = vmatpush2.bf16.msra.mxu0 %v190
    %266 = vmatprep.subr.bf16.mxu0 %v189
    %267 = vmatpush2.bf16.msra.mxu0 %v188
    %268 = vmatprep.mubr.bf16.mxu0 %v31
    %269 = vmatmul.mubr.bf16.gmra.mxu0 %v30
    %v270 = vpop.f32.mrf.mxu0
    %v271 = vadd.f32 %v69, %v270
    %v272 = vpop.f32.mrf.mxu0
    %v273 = vadd.f32 %v73, %v272
    %v274 = vpop.f32.mrf.mxu0
    %v275 = vpop.f32.mrf.mxu0
    %276 = vdwg.mxu0
    %v277 = vpack.c.bf16 %v271, %v271
    %v278 = vpack.c.bf16 %v273, %v273
    %s279 = scalar_lea.vmem [#allocation2], 256
    %v280 = vld [vmem:[%s279] sm:$0xff]
    %v281 = vld [vmem:[%s279 + $0x8] sm:$0xff]
    %v282 = vld [vmem:[%s279 + $0x10] sm:$0xff]
    %v283 = vld [vmem:[%s279 + $0x18] sm:$0xff]
    %v284 = vld [vmem:[%s279 + $0x20] sm:$0xff]
    %v285 = vld [vmem:[%s279 + $0x28] sm:$0xff]
    %v286 = vld [vmem:[%s279 + $0x30] sm:$0xff]
    %v287 = vld [vmem:[%s279 + $0x38] sm:$0xff]
    %v288 = vld [vmem:[%s279 + $0x40] sm:$0xff]
    %v289 = vld [vmem:[%s279 + $0x48] sm:$0xff]
    %v290 = vld [vmem:[%s279 + $0x50] sm:$0xff]
    %v291 = vld [vmem:[%s279 + $0x58] sm:$0xff]
    %v292 = vld [vmem:[%s279 + $0x60] sm:$0xff]
    %v293 = vld [vmem:[%s279 + $0x68] sm:$0xff]
    %v294 = vld [vmem:[%s279 + $0x70] sm:$0xff]
    %v295 = vld [vmem:[%s279 + $0x78] sm:$0xff]
    %v296 = vld [vmem:[%s279 + $0x80] sm:$0xff]
    %v297 = vld [vmem:[%s279 + $0x88] sm:$0xff]
    %v298 = vld [vmem:[%s279 + $0x90] sm:$0xff]
    %v299 = vld [vmem:[%s279 + $0x98] sm:$0xff]
    %v300 = vld [vmem:[%s279 + $0xa0] sm:$0xff]
    %v301 = vld [vmem:[%s279 + $0xa8] sm:$0xff]
    %v302 = vld [vmem:[%s279 + $0xb0] sm:$0xff]
    %v303 = vld [vmem:[%s279 + $0xb8] sm:$0xff]
    %v304 = vld [vmem:[%s279 + $0xc0] sm:$0xff]
    %v305 = vld [vmem:[%s279 + $0xc8] sm:$0xff]
    %v306 = vld [vmem:[%s279 + $0xd0] sm:$0xff]
    %v307 = vld [vmem:[%s279 + $0xd8] sm:$0xff]
    %v308 = vld [vmem:[%s279 + $0xe0] sm:$0xff]
    %v309 = vld [vmem:[%s279 + $0xe8] sm:$0xff]
    %v310 = vld [vmem:[%s279 + $0xf0] sm:$0xff]
    %v311 = vld [vmem:[%s279 + $0xf8] sm:$0xff]
    %s312 = scalar_lea.vmem %s2, 2
    %v313 = vld [vmem:[%s312] sm:$0x3]
    %v315 = vlaneseq
    %v316 = vshrl.u32 %v315, 7
    %v317 = vsub.s32 0, %v316
    %v318 = vrot.slane %v313, %v317
    %v319 = vlaneseq
    %v320 = vshrl.u32 %v319, 7
    %v321 = vsub.s32 1, %v320
    %v322 = vrot.slane %v313, %v321
    %v357 = vunpack.c.l.b16 %v280
    %v358 = vunpack.c.h.b16 %v280
    %v359 = vunpack.c.l.b16 %v281
    %v360 = vunpack.c.h.b16 %v281
    %v361 = vunpack.c.l.b16 %v282
    %v362 = vunpack.c.h.b16 %v282
    %v363 = vunpack.c.l.b16 %v283
    %v364 = vunpack.c.h.b16 %v283
    %v365 = vunpack.c.l.b16 %v284
    %v366 = vunpack.c.h.b16 %v284
    %v367 = vunpack.c.l.b16 %v285
    %v368 = vunpack.c.h.b16 %v285
    %v369 = vunpack.c.l.b16 %v286
    %v370 = vunpack.c.h.b16 %v286
    %v371 = vunpack.c.l.b16 %v287
    %v372 = vunpack.c.h.b16 %v287
    %v373 = vunpack.c.l.b16 %v288
    %v374 = vunpack.c.h.b16 %v288
    %v375 = vunpack.c.l.b16 %v289
    %v376 = vunpack.c.h.b16 %v289
    %v377 = vunpack.c.l.b16 %v290
    %v378 = vunpack.c.h.b16 %v290
    %v379 = vunpack.c.l.b16 %v291
    %v380 = vunpack.c.h.b16 %v291
    %v381 = vunpack.c.l.b16 %v292
    %v382 = vunpack.c.h.b16 %v292
    %v383 = vunpack.c.l.b16 %v293
    %v384 = vunpack.c.h.b16 %v293
    %v385 = vunpack.c.l.b16 %v294
    %v386 = vunpack.c.h.b16 %v294
    %v387 = vunpack.c.l.b16 %v295
    %v388 = vunpack.c.h.b16 %v295
    %v389 = vunpack.c.l.b16 %v296
    %v390 = vunpack.c.h.b16 %v296
    %v391 = vunpack.c.l.b16 %v297
    %v392 = vunpack.c.h.b16 %v297
    %v393 = vunpack.c.l.b16 %v298
    %v394 = vunpack.c.h.b16 %v298
    %v395 = vunpack.c.l.b16 %v299
    %v396 = vunpack.c.h.b16 %v299
    %v397 = vunpack.c.l.b16 %v300
    %v398 = vunpack.c.h.b16 %v300
    %v399 = vunpack.c.l.b16 %v301
    %v400 = vunpack.c.h.b16 %v301
    %v401 = vunpack.c.l.b16 %v302
    %v402 = vunpack.c.h.b16 %v302
    %v403 = vunpack.c.l.b16 %v303
    %v404 = vunpack.c.h.b16 %v303
    %v405 = vunpack.c.l.b16 %v304
    %v406 = vunpack.c.h.b16 %v304
    %v407 = vunpack.c.l.b16 %v305
    %v408 = vunpack.c.h.b16 %v305
    %v409 = vunpack.c.l.b16 %v306
    %v410 = vunpack.c.h.b16 %v306
    %v411 = vunpack.c.l.b16 %v307
    %v412 = vunpack.c.h.b16 %v307
    %v413 = vunpack.c.l.b16 %v308
    %v414 = vunpack.c.h.b16 %v308
    %v415 = vunpack.c.l.b16 %v309
    %v416 = vunpack.c.h.b16 %v309
    %v417 = vunpack.c.l.b16 %v310
    %v418 = vunpack.c.h.b16 %v310
    %v419 = vunpack.c.l.b16 %v311
    %v420 = vunpack.c.h.b16 %v311
    %v421 = vpack.c.b16 %v359, %v357
    %v422 = vpack.c.b16 %v360, %v358
    %v423 = vpack.c.b16 %v363, %v361
    %v424 = vpack.c.b16 %v364, %v362
    %v425 = vpack.c.b16 %v367, %v365
    %v426 = vpack.c.b16 %v368, %v366
    %v427 = vpack.c.b16 %v371, %v369
    %v428 = vpack.c.b16 %v372, %v370
    %v429 = vpack.c.b16 %v375, %v373
    %v430 = vpack.c.b16 %v376, %v374
    %v431 = vpack.c.b16 %v379, %v377
    %v432 = vpack.c.b16 %v380, %v378
    %v433 = vpack.c.b16 %v383, %v381
    %v434 = vpack.c.b16 %v384, %v382
    %v435 = vpack.c.b16 %v387, %v385
    %v436 = vpack.c.b16 %v388, %v386
    %v437 = vpack.c.b16 %v391, %v389
    %v438 = vpack.c.b16 %v392, %v390
    %v439 = vpack.c.b16 %v395, %v393
    %v440 = vpack.c.b16 %v396, %v394
    %v441 = vpack.c.b16 %v399, %v397
    %v442 = vpack.c.b16 %v400, %v398
    %v443 = vpack.c.b16 %v403, %v401
    %v444 = vpack.c.b16 %v404, %v402
    %v445 = vpack.c.b16 %v407, %v405
    %v446 = vpack.c.b16 %v408, %v406
    %v447 = vpack.c.b16 %v411, %v409
    %v448 = vpack.c.b16 %v412, %v410
    %v449 = vpack.c.b16 %v415, %v413
    %v450 = vpack.c.b16 %v416, %v414
    %v451 = vpack.c.b16 %v419, %v417
    %v452 = vpack.c.b16 %v420, %v418
    %485 = vmatprep.subr.bf16.mxu0 %v436
    %486 = vmatpush1.bf16.msra.mxu0 %v435
    %487 = vmatprep.subr.bf16.mxu0 %v434
    %488 = vmatpush1.bf16.msra.mxu0 %v433
    %489 = vmatprep.subr.bf16.mxu0 %v432
    %490 = vmatpush1.bf16.msra.mxu0 %v431
    %491 = vmatprep.subr.bf16.mxu0 %v430
    %492 = vmatpush1.bf16.msra.mxu0 %v429
    %493 = vmatprep.subr.bf16.mxu0 %v428
    %494 = vmatpush1.bf16.msra.mxu0 %v427
    %495 = vmatprep.subr.bf16.mxu0 %v426
    %496 = vmatpush1.bf16.msra.mxu0 %v425
    %497 = vmatprep.subr.bf16.mxu0 %v424
    %498 = vmatpush1.bf16.msra.mxu0 %v423
    %499 = vmatprep.subr.bf16.mxu0 %v422
    %500 = vmatpush1.bf16.msra.mxu0 %v421
    %501 = vmatprep.subr.bf16.mxu0 %v452
    %502 = vmatpush2.bf16.msra.mxu0 %v451
    %503 = vmatprep.subr.bf16.mxu0 %v450
    %504 = vmatpush2.bf16.msra.mxu0 %v449
    %505 = vmatprep.subr.bf16.mxu0 %v448
    %506 = vmatpush2.bf16.msra.mxu0 %v447
    %507 = vmatprep.subr.bf16.mxu0 %v446
    %508 = vmatpush2.bf16.msra.mxu0 %v445
    %509 = vmatprep.subr.bf16.mxu0 %v444
    %510 = vmatpush2.bf16.msra.mxu0 %v443
    %511 = vmatprep.subr.bf16.mxu0 %v442
    %512 = vmatpush2.bf16.msra.mxu0 %v441
    %513 = vmatprep.subr.bf16.mxu0 %v440
    %514 = vmatpush2.bf16.msra.mxu0 %v439
    %515 = vmatprep.subr.bf16.mxu0 %v438
    %516 = vmatpush2.bf16.msra.mxu0 %v437
    %517 = vmatprep.mubr.bf16.mxu0 %v278
    %518 = vmatmul.mubr.bf16.gmra.mxu0 %v277
    %v519 = vpop.f32.mrf.mxu0
    %v520 = vadd.f32 %v318, %v519
    %v521 = vpop.f32.mrf.mxu0
    %v522 = vadd.f32 %v322, %v521
    %v523 = vpop.f32.mrf.mxu0
    %v524 = vpop.f32.mrf.mxu0
    %525 = vdwg.mxu0
    %v526 = vpack.c.bf16 %v520, %v520
    %v527 = vpack.c.bf16 %v522, %v522
    %s528 = scalar_lea.vmem [#allocation2], 512
    %v529 = vld [vmem:[%s528] sm:$0xff]
    %v530 = vld [vmem:[%s528 + $0x8] sm:$0xff]
    %v531 = vld [vmem:[%s528 + $0x10] sm:$0xff]
    %v532 = vld [vmem:[%s528 + $0x18] sm:$0xff]
    %v533 = vld [vmem:[%s528 + $0x20] sm:$0xff]
    %v534 = vld [vmem:[%s528 + $0x28] sm:$0xff]
    %v535 = vld [vmem:[%s528 + $0x30] sm:$0xff]
    %v536 = vld [vmem:[%s528 + $0x38] sm:$0xff]
    %v537 = vld [vmem:[%s528 + $0x40] sm:$0xff]
    %v538 = vld [vmem:[%s528 + $0x48] sm:$0xff]
    %v539 = vld [vmem:[%s528 + $0x50] sm:$0xff]
    %v540 = vld [vmem:[%s528 + $0x58] sm:$0xff]
    %v541 = vld [vmem:[%s528 + $0x60] sm:$0xff]
    %v542 = vld [vmem:[%s528 + $0x68] sm:$0xff]
    %v543 = vld [vmem:[%s528 + $0x70] sm:$0xff]
    %v544 = vld [vmem:[%s528 + $0x78] sm:$0xff]
    %v545 = vld [vmem:[%s528 + $0x80] sm:$0xff]
    %v546 = vld [vmem:[%s528 + $0x88] sm:$0xff]
    %v547 = vld [vmem:[%s528 + $0x90] sm:$0xff]
    %v548 = vld [vmem:[%s528 + $0x98] sm:$0xff]
    %v549 = vld [vmem:[%s528 + $0xa0] sm:$0xff]
    %v550 = vld [vmem:[%s528 + $0xa8] sm:$0xff]
    %v551 = vld [vmem:[%s528 + $0xb0] sm:$0xff]
    %v552 = vld [vmem:[%s528 + $0xb8] sm:$0xff]
    %v553 = vld [vmem:[%s528 + $0xc0] sm:$0xff]
    %v554 = vld [vmem:[%s528 + $0xc8] sm:$0xff]
    %v555 = vld [vmem:[%s528 + $0xd0] sm:$0xff]
    %v556 = vld [vmem:[%s528 + $0xd8] sm:$0xff]
    %v557 = vld [vmem:[%s528 + $0xe0] sm:$0xff]
    %v558 = vld [vmem:[%s528 + $0xe8] sm:$0xff]
    %v559 = vld [vmem:[%s528 + $0xf0] sm:$0xff]
    %v560 = vld [vmem:[%s528 + $0xf8] sm:$0xff]
    %s561 = scalar_lea.vmem %s2, 4
    %v562 = vld [vmem:[%s561] sm:$0x3]
    %v564 = vlaneseq
    %v565 = vshrl.u32 %v564, 7
    %v566 = vsub.s32 0, %v565
    %v567 = vrot.slane %v562, %v566
    %v568 = vlaneseq
    %v569 = vshrl.u32 %v568, 7
    %v570 = vsub.s32 1, %v569
    %v571 = vrot.slane %v562, %v570
    %v606 = vunpack.c.l.b16 %v529
    %v607 = vunpack.c.h.b16 %v529
    %v608 = vunpack.c.l.b16 %v530
    %v609 = vunpack.c.h.b16 %v530
    %v610 = vunpack.c.l.b16 %v531
    %v611 = vunpack.c.h.b16 %v531
    %v612 = vunpack.c.l.b16 %v532
    %v613 = vunpack.c.h.b16 %v532
    %v614 = vunpack.c.l.b16 %v533
    %v615 = vunpack.c.h.b16 %v533
    %v616 = vunpack.c.l.b16 %v534
    %v617 = vunpack.c.h.b16 %v534
    %v618 = vunpack.c.l.b16 %v535
    %v619 = vunpack.c.h.b16 %v535
    %v620 = vunpack.c.l.b16 %v536
    %v621 = vunpack.c.h.b16 %v536
    %v622 = vunpack.c.l.b16 %v537
    %v623 = vunpack.c.h.b16 %v537
    %v624 = vunpack.c.l.b16 %v538
    %v625 = vunpack.c.h.b16 %v538
    %v626 = vunpack.c.l.b16 %v539
    %v627 = vunpack.c.h.b16 %v539
    %v628 = vunpack.c.l.b16 %v540
    %v629 = vunpack.c.h.b16 %v540
    %v630 = vunpack.c.l.b16 %v541
    %v631 = vunpack.c.h.b16 %v541
    %v632 = vunpack.c.l.b16 %v542
    %v633 = vunpack.c.h.b16 %v542
    %v634 = vunpack.c.l.b16 %v543
    %v635 = vunpack.c.h.b16 %v543
    %v636 = vunpack.c.l.b16 %v544
    %v637 = vunpack.c.h.b16 %v544
    %v638 = vunpack.c.l.b16 %v545
    %v639 = vunpack.c.h.b16 %v545
    %v640 = vunpack.c.l.b16 %v546
    %v641 = vunpack.c.h.b16 %v546
    %v642 = vunpack.c.l.b16 %v547
    %v643 = vunpack.c.h.b16 %v547
    %v644 = vunpack.c.l.b16 %v548
    %v645 = vunpack.c.h.b16 %v548
    %v646 = vunpack.c.l.b16 %v549
    %v647 = vunpack.c.h.b16 %v549
    %v648 = vunpack.c.l.b16 %v550
    %v649 = vunpack.c.h.b16 %v550
    %v650 = vunpack.c.l.b16 %v551
    %v651 = vunpack.c.h.b16 %v551
    %v652 = vunpack.c.l.b16 %v552
    %v653 = vunpack.c.h.b16 %v552
    %v654 = vunpack.c.l.b16 %v553
    %v655 = vunpack.c.h.b16 %v553
    %v656 = vunpack.c.l.b16 %v554
    %v657 = vunpack.c.h.b16 %v554
    %v658 = vunpack.c.l.b16 %v555
    %v659 = vunpack.c.h.b16 %v555
    %v660 = vunpack.c.l.b16 %v556
    %v661 = vunpack.c.h.b16 %v556
    %v662 = vunpack.c.l.b16 %v557
    %v663 = vunpack.c.h.b16 %v557
    %v664 = vunpack.c.l.b16 %v558
    %v665 = vunpack.c.h.b16 %v558
    %v666 = vunpack.c.l.b16 %v559
    %v667 = vunpack.c.h.b16 %v559
    %v668 = vunpack.c.l.b16 %v560
    %v669 = vunpack.c.h.b16 %v560
    %v670 = vpack.c.b16 %v608, %v606
    %v671 = vpack.c.b16 %v609, %v607
    %v672 = vpack.c.b16 %v612, %v610
    %v673 = vpack.c.b16 %v613, %v611
    %v674 = vpack.c.b16 %v616, %v614
    %v675 = vpack.c.b16 %v617, %v615
    %v676 = vpack.c.b16 %v620, %v618
    %v677 = vpack.c.b16 %v621, %v619
    %v678 = vpack.c.b16 %v624, %v622
    %v679 = vpack.c.b16 %v625, %v623
    %v680 = vpack.c.b16 %v628, %v626
    %v681 = vpack.c.b16 %v629, %v627
    %v682 = vpack.c.b16 %v632, %v630
    %v683 = vpack.c.b16 %v633, %v631
    %v684 = vpack.c.b16 %v636, %v634
    %v685 = vpack.c.b16 %v637, %v635
    %v686 = vpack.c.b16 %v640, %v638
    %v687 = vpack.c.b16 %v641, %v639
    %v688 = vpack.c.b16 %v644, %v642
    %v689 = vpack.c.b16 %v645, %v643
    %v690 = vpack.c.b16 %v648, %v646
    %v691 = vpack.c.b16 %v649, %v647
    %v692 = vpack.c.b16 %v652, %v650
    %v693 = vpack.c.b16 %v653, %v651
    %v694 = vpack.c.b16 %v656, %v654
    %v695 = vpack.c.b16 %v657, %v655
    %v696 = vpack.c.b16 %v660, %v658
    %v697 = vpack.c.b16 %v661, %v659
    %v698 = vpack.c.b16 %v664, %v662
    %v699 = vpack.c.b16 %v665, %v663
    %v700 = vpack.c.b16 %v668, %v666
    %v701 = vpack.c.b16 %v669, %v667
    %734 = vmatprep.subr.bf16.mxu0 %v685
    %735 = vmatpush1.bf16.msra.mxu0 %v684
    %736 = vmatprep.subr.bf16.mxu0 %v683
    %737 = vmatpush1.bf16.msra.mxu0 %v682
    %738 = vmatprep.subr.bf16.mxu0 %v681
    %739 = vmatpush1.bf16.msra.mxu0 %v680
    %740 = vmatprep.subr.bf16.mxu0 %v679
    %741 = vmatpush1.bf16.msra.mxu0 %v678
    %742 = vmatprep.subr.bf16.mxu0 %v677
    %743 = vmatpush1.bf16.msra.mxu0 %v676
    %744 = vmatprep.subr.bf16.mxu0 %v675
    %745 = vmatpush1.bf16.msra.mxu0 %v674
    %746 = vmatprep.subr.bf16.mxu0 %v673
    %747 = vmatpush1.bf16.msra.mxu0 %v672
    %748 = vmatprep.subr.bf16.mxu0 %v671
    %749 = vmatpush1.bf16.msra.mxu0 %v670
    %750 = vmatprep.subr.bf16.mxu0 %v701
    %751 = vmatpush2.bf16.msra.mxu0 %v700
    %752 = vmatprep.subr.bf16.mxu0 %v699
    %753 = vmatpush2.bf16.msra.mxu0 %v698
    %754 = vmatprep.subr.bf16.mxu0 %v697
    %755 = vmatpush2.bf16.msra.mxu0 %v696
    %756 = vmatprep.subr.bf16.mxu0 %v695
    %757 = vmatpush2.bf16.msra.mxu0 %v694
    %758 = vmatprep.subr.bf16.mxu0 %v693
    %759 = vmatpush2.bf16.msra.mxu0 %v692
    %760 = vmatprep.subr.bf16.mxu0 %v691
    %761 = vmatpush2.bf16.msra.mxu0 %v690
    %762 = vmatprep.subr.bf16.mxu0 %v689
    %763 = vmatpush2.bf16.msra.mxu0 %v688
    %764 = vmatprep.subr.bf16.mxu0 %v687
    %765 = vmatpush2.bf16.msra.mxu0 %v686
    %766 = vmatprep.mubr.bf16.mxu0 %v527
    %767 = vmatmul.mubr.bf16.gmra.mxu0 %v526
    %v768 = vpop.f32.mrf.mxu0
    %v769 = vadd.f32 %v567, %v768
    %v770 = vpop.f32.mrf.mxu0
    %v771 = vadd.f32 %v571, %v770
    %v772 = vpop.f32.mrf.mxu0
    %v773 = vpop.f32.mrf.mxu0
    %774 = vdwg.mxu0
    %v775 = vpack.c.bf16 %v769, %v769
    %v776 = vpack.c.bf16 %v771, %v771
    %s777 = scalar_lea.vmem [#allocation2], 768
    %v778 = vld [vmem:[%s777] sm:$0xff]
    %v779 = vld [vmem:[%s777 + $0x8] sm:$0xff]
    %v780 = vld [vmem:[%s777 + $0x10] sm:$0xff]
    %v781 = vld [vmem:[%s777 + $0x18] sm:$0xff]
    %v782 = vld [vmem:[%s777 + $0x20] sm:$0xff]
    %v783 = vld [vmem:[%s777 + $0x28] sm:$0xff]
    %v784 = vld [vmem:[%s777 + $0x30] sm:$0xff]
    %v785 = vld [vmem:[%s777 + $0x38] sm:$0xff]
    %v786 = vld [vmem:[%s777 + $0x40] sm:$0xff]
    %v787 = vld [vmem:[%s777 + $0x48] sm:$0xff]
    %v788 = vld [vmem:[%s777 + $0x50] sm:$0xff]
    %v789 = vld [vmem:[%s777 + $0x58] sm:$0xff]
    %v790 = vld [vmem:[%s777 + $0x60] sm:$0xff]
    %v791 = vld [vmem:[%s777 + $0x68] sm:$0xff]
    %v792 = vld [vmem:[%s777 + $0x70] sm:$0xff]
    %v793 = vld [vmem:[%s777 + $0x78] sm:$0xff]
    %v794 = vld [vmem:[%s777 + $0x80] sm:$0xff]
    %v795 = vld [vmem:[%s777 + $0x88] sm:$0xff]
    %v796 = vld [vmem:[%s777 + $0x90] sm:$0xff]
    %v797 = vld [vmem:[%s777 + $0x98] sm:$0xff]
    %v798 = vld [vmem:[%s777 + $0xa0] sm:$0xff]
    %v799 = vld [vmem:[%s777 + $0xa8] sm:$0xff]
    %v800 = vld [vmem:[%s777 + $0xb0] sm:$0xff]
    %v801 = vld [vmem:[%s777 + $0xb8] sm:$0xff]
    %v802 = vld [vmem:[%s777 + $0xc0] sm:$0xff]
    %v803 = vld [vmem:[%s777 + $0xc8] sm:$0xff]
    %v804 = vld [vmem:[%s777 + $0xd0] sm:$0xff]
    %v805 = vld [vmem:[%s777 + $0xd8] sm:$0xff]
    %v806 = vld [vmem:[%s777 + $0xe0] sm:$0xff]
    %v807 = vld [vmem:[%s777 + $0xe8] sm:$0xff]
    %v808 = vld [vmem:[%s777 + $0xf0] sm:$0xff]
    %v809 = vld [vmem:[%s777 + $0xf8] sm:$0xff]
    %s810 = scalar_lea.vmem %s2, 6
    %v811 = vld [vmem:[%s810] sm:$0x3]
    %v813 = vlaneseq
    %v814 = vshrl.u32 %v813, 7
    %v815 = vsub.s32 0, %v814
    %v816 = vrot.slane %v811, %v815
    %v817 = vlaneseq
    %v818 = vshrl.u32 %v817, 7
    %v819 = vsub.s32 1, %v818
    %v820 = vrot.slane %v811, %v819
    %v855 = vunpack.c.l.b16 %v778
    %v856 = vunpack.c.h.b16 %v778
    %v857 = vunpack.c.l.b16 %v779
    %v858 = vunpack.c.h.b16 %v779
    %v859 = vunpack.c.l.b16 %v780
    %v860 = vunpack.c.h.b16 %v780
    %v861 = vunpack.c.l.b16 %v781
    %v862 = vunpack.c.h.b16 %v781
    %v863 = vunpack.c.l.b16 %v782
    %v864 = vunpack.c.h.b16 %v782
    %v865 = vunpack.c.l.b16 %v783
    %v866 = vunpack.c.h.b16 %v783
    %v867 = vunpack.c.l.b16 %v784
    %v868 = vunpack.c.h.b16 %v784
    %v869 = vunpack.c.l.b16 %v785
    %v870 = vunpack.c.h.b16 %v785
    %v871 = vunpack.c.l.b16 %v786
    %v872 = vunpack.c.h.b16 %v786
    %v873 = vunpack.c.l.b16 %v787
    %v874 = vunpack.c.h.b16 %v787
    %v875 = vunpack.c.l.b16 %v788
    %v876 = vunpack.c.h.b16 %v788
    %v877 = vunpack.c.l.b16 %v789
    %v878 = vunpack.c.h.b16 %v789
    %v879 = vunpack.c.l.b16 %v790
    %v880 = vunpack.c.h.b16 %v790
    %v881 = vunpack.c.l.b16 %v791
    %v882 = vunpack.c.h.b16 %v791
    %v883 = vunpack.c.l.b16 %v792
    %v884 = vunpack.c.h.b16 %v792
    %v885 = vunpack.c.l.b16 %v793
    %v886 = vunpack.c.h.b16 %v793
    %v887 = vunpack.c.l.b16 %v794
    %v888 = vunpack.c.h.b16 %v794
    %v889 = vunpack.c.l.b16 %v795
    %v890 = vunpack.c.h.b16 %v795
    %v891 = vunpack.c.l.b16 %v796
    %v892 = vunpack.c.h.b16 %v796
    %v893 = vunpack.c.l.b16 %v797
    %v894 = vunpack.c.h.b16 %v797
    %v895 = vunpack.c.l.b16 %v798
    %v896 = vunpack.c.h.b16 %v798
    %v897 = vunpack.c.l.b16 %v799
    %v898 = vunpack.c.h.b16 %v799
    %v899 = vunpack.c.l.b16 %v800
    %v900 = vunpack.c.h.b16 %v800
    %v901 = vunpack.c.l.b16 %v801
    %v902 = vunpack.c.h.b16 %v801
    %v903 = vunpack.c.l.b16 %v802
    %v904 = vunpack.c.h.b16 %v802
    %v905 = vunpack.c.l.b16 %v803
    %v906 = vunpack.c.h.b16 %v803
    %v907 = vunpack.c.l.b16 %v804
    %v908 = vunpack.c.h.b16 %v804
    %v909 = vunpack.c.l.b16 %v805
    %v910 = vunpack.c.h.b16 %v805
    %v911 = vunpack.c.l.b16 %v806
    %v912 = vunpack.c.h.b16 %v806
    %v913 = vunpack.c.l.b16 %v807
    %v914 = vunpack.c.h.b16 %v807
    %v915 = vunpack.c.l.b16 %v808
    %v916 = vunpack.c.h.b16 %v808
    %v917 = vunpack.c.l.b16 %v809
    %v918 = vunpack.c.h.b16 %v809
    %v919 = vpack.c.b16 %v857, %v855
    %v920 = vpack.c.b16 %v858, %v856
    %v921 = vpack.c.b16 %v861, %v859
    %v922 = vpack.c.b16 %v862, %v860
    %v923 = vpack.c.b16 %v865, %v863
    %v924 = vpack.c.b16 %v866, %v864
    %v925 = vpack.c.b16 %v869, %v867
    %v926 = vpack.c.b16 %v870, %v868
    %v927 = vpack.c.b16 %v873, %v871
    %v928 = vpack.c.b16 %v874, %v872
    %v929 = vpack.c.b16 %v877, %v875
    %v930 = vpack.c.b16 %v878, %v876
    %v931 = vpack.c.b16 %v881, %v879
    %v932 = vpack.c.b16 %v882, %v880
    %v933 = vpack.c.b16 %v885, %v883
    %v934 = vpack.c.b16 %v886, %v884
    %v935 = vpack.c.b16 %v889, %v887
    %v936 = vpack.c.b16 %v890, %v888
    %v937 = vpack.c.b16 %v893, %v891
    %v938 = vpack.c.b16 %v894, %v892
    %v939 = vpack.c.b16 %v897, %v895
    %v940 = vpack.c.b16 %v898, %v896
    %v941 = vpack.c.b16 %v901, %v899
    %v942 = vpack.c.b16 %v902, %v900
    %v943 = vpack.c.b16 %v905, %v903
    %v944 = vpack.c.b16 %v906, %v904
    %v945 = vpack.c.b16 %v909, %v907
    %v946 = vpack.c.b16 %v910, %v908
    %v947 = vpack.c.b16 %v913, %v911
    %v948 = vpack.c.b16 %v914, %v912
    %v949 = vpack.c.b16 %v917, %v915
    %v950 = vpack.c.b16 %v918, %v916
    %983 = vmatprep.subr.bf16.mxu0 %v934
    %984 = vmatpush1.bf16.msra.mxu0 %v933
    %985 = vmatprep.subr.bf16.mxu0 %v932
    %986 = vmatpush1.bf16.msra.mxu0 %v931
    %987 = vmatprep.subr.bf16.mxu0 %v930
    %988 = vmatpush1.bf16.msra.mxu0 %v929
    %989 = vmatprep.subr.bf16.mxu0 %v928
    %990 = vmatpush1.bf16.msra.mxu0 %v927
    %991 = vmatprep.subr.bf16.mxu0 %v926
    %992 = vmatpush1.bf16.msra.mxu0 %v925
    %993 = vmatprep.subr.bf16.mxu0 %v924
    %994 = vmatpush1.bf16.msra.mxu0 %v923
    %995 = vmatprep.subr.bf16.mxu0 %v922
    %996 = vmatpush1.bf16.msra.mxu0 %v921
    %997 = vmatprep.subr.bf16.mxu0 %v920
    %998 = vmatpush1.bf16.msra.mxu0 %v919
    %999 = vmatprep.subr.bf16.mxu0 %v950
    %1000 = vmatpush2.bf16.msra.mxu0 %v949
    %1001 = vmatprep.subr.bf16.mxu0 %v948
    %1002 = vmatpush2.bf16.msra.mxu0 %v947
    %1003 = vmatprep.subr.bf16.mxu0 %v946
    %1004 = vmatpush2.bf16.msra.mxu0 %v945
    %1005 = vmatprep.subr.bf16.mxu0 %v944
    %1006 = vmatpush2.bf16.msra.mxu0 %v943
    %1007 = vmatprep.subr.bf16.mxu0 %v942
    %1008 = vmatpush2.bf16.msra.mxu0 %v941
    %1009 = vmatprep.subr.bf16.mxu0 %v940
    %1010 = vmatpush2.bf16.msra.mxu0 %v939
    %1011 = vmatprep.subr.bf16.mxu0 %v938
    %1012 = vmatpush2.bf16.msra.mxu0 %v937
    %1013 = vmatprep.subr.bf16.mxu0 %v936
    %1014 = vmatpush2.bf16.msra.mxu0 %v935
    %1015 = vmatprep.mubr.bf16.mxu0 %v776
    %1016 = vmatmul.mubr.bf16.gmra.mxu0 %v775
    %v1017 = vpop.f32.mrf.mxu0
    %v1018 = vadd.f32 %v816, %v1017
    %v1019 = vpop.f32.mrf.mxu0
    %v1020 = vadd.f32 %v820, %v1019
    %v1021 = vpop.f32.mrf.mxu0
    %v1022 = vpop.f32.mrf.mxu0
    %1023 = vdwg.mxu0
    %1024 = vst [vmem:[%s3] sm:$0xff] %v1018
    %1025 = vst [vmem:[%s3 + $0x8] sm:$0xff] %v1020
    // Predicated region
    $region18: #{mlp_forward.1} parent=1 // pred_check
      _
    $region19: #{mlp_forward.1} parent=1 // pred_check_branch
      %1027 = sbr.rel (0) target = $region21
    $region20: #{mlp_forward.1} parent=1 // pred_region
      _
    $region21: #{mlp_forward.1} parent=1 // pred_fallthru
      _
    // Predicated region
    $region22: #{mlp_forward.1} parent=1 // pred_check
      _
    $region23: #{mlp_forward.1} parent=1 // pred_check_branch
      %1029 = sbr.rel (0) target = $region25
    $region24: #{mlp_forward.1} parent=1 // pred_region
      _
    $region25: #{mlp_forward.1} parent=1 // pred_fallthru
      _
    %1030 = vsyncpa [#allocation3], 1

</llo_original>
